<compile_context>
chip_gen: v7x
topology: tpu7x:2x2x1
jax: 0.10.0
libtpu: 0.0.40
codegen_flags: <defaults>
</compile_context>

<pallas_src>
import jax
import jax.numpy as jnp
from jax.experimental import pallas as pl
from jax.experimental.pallas import tpu as pltpu


LANE = 128          # lane width: fused output columns padded to a multiple of this
_TB = 512           # batch tile (rows) once a real batch grid kicks in


def _keypoint_kernel(z_ref, w_ref, b_ref, out_ref):
    # Fused heads: sigmoid(z @ [w1|w2|0] + [b1|b2|0]), bf16 MXU inputs, f32 accumulate.
    z_bf16 = z_ref[...].astype(jnp.bfloat16)
    logits = jnp.dot(z_bf16, w_ref[...], preferred_element_type=jnp.float32)
    logits = logits + b_ref[...]
    # sigmoid = 1 / (1 + exp(-x)); exp and the approx reciprocal both run on the EUP.
    sig = pl.reciprocal(1.0 + jnp.exp(-logits), approx=True)
    out_ref[...] = sig.astype(out_ref.dtype)


def keypoint_model_forward_fused(z, w_fused, b_fused):
    """Fused forward for both heads; returns the lane-dense (B, out_pad) slab.

    z:        (B, dim)        float32
    w_fused:  (dim, out_pad)  bfloat16, columns [0:out_f]=w1, [out_f:2*out_f]=w2, rest 0
    b_fused:  (1, out_pad)    float32, same column layout
    """
    B, dim = z.shape
    out_pad = w_fused.shape[1]

    if B <= _TB:
        tb = B                     # single full-array block (exempt from (8,128) rule)
        grid = (1,)
    else:
        tb = _TB                   # multiple of 8 sublanes
        grid = (pl.cdiv(B, tb),)

    bytes_accessed = (
        4 * B * dim                # z (f32)
        + 2 * dim * out_pad        # w (bf16)
        + 4 * out_pad              # b (f32)
        + 4 * B * out_pad          # out (f32)
    )
    cost = pl.CostEstimate(
        flops=2 * B * dim * out_pad,
        transcendentals=B * out_pad,     # exp (+ approx rcp) on the EUP
        bytes_accessed=bytes_accessed,
    )

    return pl.pallas_call(
        _keypoint_kernel,
        out_shape=jax.ShapeDtypeStruct((B, out_pad), z.dtype),
        grid=grid,
        in_specs=[
            pl.BlockSpec((tb, dim), lambda i: (i, 0)),
            pl.BlockSpec((dim, out_pad), lambda i: (0, 0)),
            pl.BlockSpec((1, out_pad), lambda i: (0, 0)),
        ],
        out_specs=pl.BlockSpec((tb, out_pad), lambda i: (i, 0)),
        compiler_params=pltpu.CompilerParams(
            dimension_semantics=("parallel",),
        ),
        cost_estimate=cost,
    )(z, w_fused, b_fused)


def keypoint_model_forward(z, w_fused, b_fused, out_f):
    """API-parity wrapper: returns (x, sigma) like the PyTorch module.

    Prefer keypoint_model_forward_fused in a real pipeline so the downstream op
    consumes the lane-dense slab directly instead of two 24-lane slices.
    """
    fused = keypoint_model_forward_fused(z, w_fused, b_fused)
    x = fused[:, :out_f]
    sigma = fused[:, out_f:2 * out_f]
    return x, sigma


def init_params(key, dim, n_keypoints=6, n_dim=2, dtype=jnp.float32):
    """Deterministic synthetic init matching nn.Linear(dim, K*D) shapes.

    Returns raw per-head params (for the pure-JAX reference) and the fused,
    lane-padded params consumed by the kernel (weights in bf16).
    """
    out_f = n_keypoints * n_dim
    out_pad = max(LANE, ((2 * out_f + LANE - 1) // LANE) * LANE)
    assert 2 * out_f <= out_pad, "fused columns must fit the padded slab"

    k1, k2, k3, k4 = jax.random.split(key, 4)
    bound = 1.0 / jnp.sqrt(dim)
    # Stored pre-transposed vs PyTorch: (dim, out_f) for z @ W.
    w1 = jax.random.uniform(k1, (dim, out_f), dtype, -bound, bound)
    b1 = jax.random.uniform(k2, (1, out_f), dtype, -bound, bound)
    w2 = jax.random.uniform(k3, (dim, out_f), dtype, -bound, bound)
    b2 = jax.random.uniform(k4, (1, out_f), dtype, -bound, bound)

    # Fuse the two heads and zero-pad columns to a lane-aligned slab.
    w_fused = (
        jnp.zeros((dim, out_pad), dtype)
        .at[:, :out_f].set(w1)
        .at[:, out_f:2 * out_f].set(w2)
        .astype(jnp.bfloat16)                  # MXU-native weight dtype
    )
    b_fused = (
        jnp.zeros((1, out_pad), dtype)
        .at[:, :out_f].set(b1)
        .at[:, out_f:2 * out_f].set(b2)
    )

    # Fixed anchor buffer (requires_grad=False in the module; unused in forward).
    anchors = jnp.array(
        [[[0.25, 0.2], [0.25, 0.8], [0.5, 0.2], [0.5, 0.8], [0.75, 0.2], [0.75, 0.8]]],
        dtype=dtype,
    )
    return (w1, b1, w2, b2), (w_fused, b_fused), anchors


if __name__ == "__main__":
    B, DIM, N_KP, N_DIM = 4, 32, 6, 2
    OUT_F = N_KP * N_DIM

    key = jax.random.PRNGKey(0)
    kz, kp = jax.random.split(key)
    z = jax.random.normal(kz, (B, DIM), jnp.float32)
    (w1, b1, w2, b2), (w_fused, b_fused), _anchors = init_params(kp, DIM, N_KP, N_DIM)

    x, sigma = keypoint_model_forward(z, w_fused, b_fused, OUT_F)
    jax.block_until_ready((x, sigma))

    # Reference check in plain JAX (same math as the PyTorch forward, f32).
    x_ref = jax.nn.sigmoid(z @ w1 + b1)
    s_ref = jax.nn.sigmoid(z @ w2 + b2)
    assert x.shape == (B, OUT_F) and sigma.shape == (B, OUT_F)
    # bf16 MXU inputs + approx reciprocal -> loosened tolerance vs exact f32 reference.
    assert jnp.allclose(x, x_ref, atol=2e-2), float(jnp.max(jnp.abs(x - x_ref)))
    assert jnp.allclose(sigma, s_ref, atol=2e-2), float(jnp.max(jnp.abs(sigma - s_ref)))

    print("KERNEL_OK")
</pallas_src>

<mosaic_0001>
module attributes {stable_mosaic.version = 11 : i64} {
  func.func @_keypoint_kernel(%arg0: i32, %arg1: memref<4x32xf32, #tpu.memory_space<vmem>>, %arg2: memref<32x128xbf16, #tpu.memory_space<vmem>>, %arg3: memref<1x128xf32, #tpu.memory_space<vmem>>, %arg4: memref<4x128xf32, #tpu.memory_space<vmem>>) attributes {dimension_semantics = [#tpu.dimension_semantics<parallel>], iteration_bounds = array<i64: 1>, scalar_prefetch = 0 : i64, scratch_operands = 0 : i64, tpu.core_type = #tpu.core_type<tc>, window_params = [{transform_indices = @transform_0, window_bounds = array<i64: 4, 32>}, {pipeline_mode = #tpu.pipeline_mode<synchronous>, transform_indices = @transform_1, window_bounds = array<i64: 32, 128>}, {pipeline_mode = #tpu.pipeline_mode<synchronous>, transform_indices = @transform_2, window_bounds = array<i64: 1, 128>}, {transform_indices = @transform_3, window_bounds = array<i64: 4, 128>}]} {
    %c0 = arith.constant 0 : index
    %c0_0 = arith.constant 0 : index
    %0 = vector.load %arg1[%c0, %c0_0] : memref<4x32xf32, #tpu.memory_space<vmem>>, vector<4x32xf32>
    %1 = arith.truncf %0 : vector<4x32xf32> to vector<4x32xbf16>
    %c0_1 = arith.constant 0 : index
    %c0_2 = arith.constant 0 : index
    %2 = vector.load %arg2[%c0_1, %c0_2] : memref<32x128xbf16, #tpu.memory_space<vmem>>, vector<32x128xbf16>
    %cst = arith.constant dense<0.000000e+00> : vector<4x128xf32>
    %3 = tpu.matmul %1, %2, %cst {dimension_numbers = #tpu.dot_dimension_numbers<[1], [0], [0], [1], [0, 0, 1, 1], [], []>} : vector<4x32xbf16>, vector<32x128xbf16>, vector<4x128xf32> -> vector<4x128xf32>
    %c0_3 = arith.constant 0 : index
    %c0_4 = arith.constant 0 : index
    %4 = vector.load %arg3[%c0_3, %c0_4] : memref<1x128xf32, #tpu.memory_space<vmem>>, vector<1x128xf32>
    %5 = vector.broadcast %4 : vector<1x128xf32> to vector<4x128xf32>
    %6 = arith.addf %3, %5 : vector<4x128xf32>
    %cst_5 = arith.constant 0.000000e+00 : f32
    %7 = vector.broadcast %cst_5 : f32 to vector<4x128xf32>
    %8 = arith.subf %7, %6 : vector<4x128xf32>
    %9 = math.exp %8 : vector<4x128xf32>
    %cst_6 = arith.constant 1.000000e+00 : f32
    %10 = vector.broadcast %cst_6 : f32 to vector<4x128xf32>
    %11 = arith.addf %10, %9 : vector<4x128xf32>
    %12 = tpu.reciprocal %11 {approx = true} : vector<4x128xf32> -> vector<4x128xf32>
    %c0_7 = arith.constant 0 : index
    %c0_8 = arith.constant 0 : index
    %13 = vector.load %arg4[%c0_7, %c0_8] : memref<4x128xf32, #tpu.memory_space<vmem>>, vector<4x128xf32>
    tpu.vector_store %arg4[%c0_7, %c0_8], %12 {strides = array<i32>} : memref<4x128xf32, #tpu.memory_space<vmem>>, vector<4x128xf32>,
    return
  }
  func.func @transform_0(%arg0: i32) -> (i32, i32) {
    %c0_i32 = arith.constant 0 : i32
    %c0_i32_0 = arith.constant 0 : i32
    return %arg0, %c0_i32 : i32, i32
  }
  func.func @transform_1(%arg0: i32) -> (i32, i32) {
    %c0_i32 = arith.constant 0 : i32
    %c0_i32_0 = arith.constant 0 : i32
    %c0_i32_1 = arith.constant 0 : i32
    return %c0_i32, %c0_i32_0 : i32, i32
  }
  func.func @transform_2(%arg0: i32) -> (i32, i32) {
    %c0_i32 = arith.constant 0 : i32
    %c0_i32_0 = arith.constant 0 : i32
    %c0_i32_1 = arith.constant 0 : i32
    return %c0_i32, %c0_i32_0 : i32, i32
  }
  func.func @transform_3(%arg0: i32) -> (i32, i32) {
    %c0_i32 = arith.constant 0 : i32
    %c0_i32_0 = arith.constant 0 : i32
    return %arg0, %c0_i32 : i32, i32
  }
}

</mosaic_0001>

<llo_original>
// kernel: tpu_custom_call.1
$region0: #{tpu_custom_call.1}
  #allocation0 [shape = 'u32[]', space=smem, size = 0x4, offset = 0x4, fixed_abs, tag = 'smem constant byte address 0x4 - core index']
  #allocation1 [shape = 'u32[144,128]{1,0:T(1,128)}', space=vmem, size = 0x12000, scoped, tag = 'internal scratch']
  %s0 = inlined_call_operand.hbm [shape: f32[4,32], index: 0, kind: input, shape index: {}]
  %s1 = inlined_call_operand.hbm [shape: bf16[32,128], index: 1, kind: input, shape index: {}]
  %s2 = inlined_call_operand.vmem [shape: f32[1,128], index: 2, kind: input, shape index: {}]
  %s3 = inlined_call_operand.hbm [shape: f32[4,128], index: 3, kind: output, shape index: {}]
  %s4 = sld [smem:[#allocation0]]
  $region30: #{tpu_custom_call.1} parent=0
    _
  %s6 = ssub.s32 1, %s4
  %s7 = scalar_select 0, %s6, %s4
  $region1: #{tpu_custom_call.1} parent=0
    #allocation2 [shape = 'u8[2048]{0}', space=vmem, size = 0x800, scoped, tag = 'input window, operand 0, single buffered']
    #allocation3 [shape = 's32[1]{0}', space=sflag, size = 0x4, scoped, tag = 'scoped memory for tpu_custom_call.1']
    #allocation4 [shape = 's32[1]{0}', space=sflag, size = 0x4, scoped, tag = 'scoped memory for tpu_custom_call.1']
    #allocation5 [shape = 'u8[8192]{0}', space=vmem, size = 0x2000, scoped, tag = 'input window, operand 1, single buffered']
    #allocation6 [shape = 's32[1]{0}', space=sflag, size = 0x4, scoped, tag = 'scoped memory for tpu_custom_call.1']
    #allocation7 [shape = 'u8[2048]{0}', space=vmem, size = 0x800, scoped, tag = 'output window, operand 0, single buffered']
    %8 = vsyncpa [#allocation3], 0
    %9 = vsyncpa [#allocation6], 0
    %10 = vsyncpa [#allocation4], 0
    // Predicated region
    $region2: #{tpu_custom_call.1} parent=1 // pred_check
      _
    $region3: #{tpu_custom_call.1} parent=1 // pred_check_branch
      %12 = sbr.rel (0) target = $region5
    $region4: #{tpu_custom_call.1} parent=1 // pred_region
      %s14 = ssub.s32 64, 64
      %15 = vsyncadd [#allocation3], %s14
      %s17 = sshll.u32 [#allocation2], 4
      %s18 = int_to_ptr.vmem [resolvable:$true] %s17
      %20 = dma.hbm_to_vmem [thread:$0]  %s0, 64, %s18, [#allocation3]
    $region5: #{tpu_custom_call.1} parent=1 // pred_fallthru
      _
    // Predicated region
    $region6: #{tpu_custom_call.1} parent=1 // pred_check
      _
    $region7: #{tpu_custom_call.1} parent=1 // pred_check_branch
      %22 = sbr.rel (0) target = $region9
    $region8: #{tpu_custom_call.1} parent=1 // pred_region
      %s24 = ssub.s32 256, 256
      %25 = vsyncadd [#allocation6], %s24
      %s26 = sshll.u32 [#allocation5], 4
      %s27 = int_to_ptr.vmem [resolvable:$true] %s26
      %32 = dma.hbm_to_vmem [thread:$0]  %s1, 256, %s27, [#allocation6], 64, 64, 4
    $region9: #{tpu_custom_call.1} parent=1 // pred_fallthru
      _
    // Predicated region
    $region10: #{tpu_custom_call.1} parent=1 // pred_check
      _
    $region11: #{tpu_custom_call.1} parent=1 // pred_check_branch
      %34 = sbr.rel (0) target = $region13
    $region12: #{tpu_custom_call.1} parent=1 // pred_region
      _
    $region13: #{tpu_custom_call.1} parent=1 // pred_fallthru
      _
    // Predicated region
    $region14: #{tpu_custom_call.1} parent=1 // pred_check
      _
    $region15: #{tpu_custom_call.1} parent=1 // pred_check_branch
      %36 = sbr.rel (0) target = $region17
    $region16: #{tpu_custom_call.1} parent=1 // pred_region
      %37 = dma.done [#allocation3], 64
    $region17: #{tpu_custom_call.1} parent=1 // pred_fallthru
      _
    // Predicated region
    $region18: #{tpu_custom_call.1} parent=1 // pred_check
      _
    $region19: #{tpu_custom_call.1} parent=1 // pred_check_branch
      %39 = sbr.rel (0) target = $region21
    $region20: #{tpu_custom_call.1} parent=1 // pred_region
      %40 = dma.done [#allocation6], 256
    $region21: #{tpu_custom_call.1} parent=1 // pred_fallthru
      _
    %v42 = vld [vmem:[#allocation2] sm:$0xf]
    %v43 = vpack.c.bf16 %v42, %v42
    %v44 = vld [vmem:[#allocation5] sm:$0xf]
    %v45 = vld [vmem:[#allocation5 + $0x4] sm:$0xf]
    %v46 = vld [vmem:[#allocation5 + $0x8] sm:$0xf]
    %v47 = vld [vmem:[#allocation5 + $0xc] sm:$0xf]
    %v48 = vld [vmem:[%s2] sm:$0x1]
    %v50 = vlaneseq
    %v51 = vshrl.u32 %v50, 7
    %v52 = vsub.s32 0, %v51
    %v53 = vrot.slane %v48, %v52
    %v59 = vunpack.c.l.b16 %v44
    %v60 = vunpack.c.l.b16 %v45
    %v61 = vunpack.c.l.b16 %v46
    %v62 = vunpack.c.l.b16 %v47
    %v63 = vpack.c.b16 %v60, %v59
    %v64 = vpack.c.b16 %v62, %v61
    %vm67 = vcmask 261120
    %v69 = vsel %vm67, %v43, 0
    %71 = vmatprep.subr.bf16.mxu0 0
    %72 = vmatpush1.bf16.msra.mxu0 %v63
    %73 = vmatprep.subr.bf16.mxu0 0
    %74 = vmatpush1.bf16.msra.mxu0 %v64
    %75 = vmatprep.subr.bf16.mxu0 0
    %76 = vmatpush1.bf16.msra.mxu0 0
    %77 = vmatprep.subr.bf16.mxu0 0
    %78 = vmatpush1.bf16.msra.mxu0 0
    %79 = vmatprep.subr.bf16.mxu0 0
    %80 = vmatpush1.bf16.msra.mxu0 0
    %81 = vmatprep.subr.bf16.mxu0 0
    %82 = vmatpush1.bf16.msra.mxu0 0
    %83 = vmatprep.subr.bf16.mxu0 0
    %84 = vmatpush1.bf16.msra.mxu0 0
    %85 = vmatprep.subr.bf16.mxu0 0
    %86 = vmatpush1.bf16.msra.mxu0 0
    %87 = vmatprep.subr.bf16.mxu0 0
    %88 = vmatpush1.bf16.msra.mxu0 0
    %89 = vmatprep.subr.bf16.mxu0 0
    %90 = vmatpush1.bf16.msra.mxu0 0
    %91 = vmatprep.subr.bf16.mxu0 0
    %92 = vmatpush1.bf16.msra.mxu0 0
    %93 = vmatprep.subr.bf16.mxu0 0
    %94 = vmatpush1.bf16.msra.mxu0 0
    %95 = vmatprep.subr.bf16.mxu0 0
    %96 = vmatpush1.bf16.msra.mxu0 0
    %97 = vmatprep.subr.bf16.mxu0 0
    %98 = vmatpush1.bf16.msra.mxu0 0
    %99 = vmatprep.subr.bf16.mxu0 0
    %100 = vmatpush1.bf16.msra.mxu0 0
    %101 = vmatprep.subr.bf16.mxu0 0
    %102 = vmatpush1.bf16.msra.mxu0 0
    %103 = vmatprep.mubr.bf16.mxu0 0
    %104 = vmatmul.mubr.bf16.gmra.mrb[0].mxu0 %v69
    %v105 = vpop.f32.mrb[0].mxu0
    %v106 = vadd.f32 %v53, %v105
    %v107 = vpop.f32.mrb[0].mxu0
    %v108 = vpop.f32.mrb[0].mxu0
    %v109 = vpop.f32.mrb[0].mxu0
    %110 = vdwg.mxu0
    %v111 = vsub.f32 0.0, %v106
    %v112 = vmul.f32 %v111, 1.442695
    %v113 = vpow.pop %v112
    %v114 = vadd.f32 %v113, 1.0
    %v115 = vrcp.pop %v114
    %116 = vst [vmem:[#allocation7] sm:$0xf] %v115
    // Predicated region
    $region22: #{tpu_custom_call.1} parent=1 // pred_check
      _
    $region23: #{tpu_custom_call.1} parent=1 // pred_check_branch
      %118 = sbr.rel (0) target = $region25
    $region24: #{tpu_custom_call.1} parent=1 // pred_region
      %s120 = ssub.s32 64, 64
      %121 = vsyncadd [#allocation4], %s120
      %s123 = sshll.u32 [#allocation7], 4
      %s124 = int_to_ptr.vmem [resolvable:$true] %s123
      %126 = dma.vmem_to_hbm [thread:$0]  %s124, 64, %s3, [#allocation4]
    $region25: #{tpu_custom_call.1} parent=1 // pred_fallthru
      _
    // Predicated region
    $region26: #{tpu_custom_call.1} parent=1 // pred_check
      _
    $region27: #{tpu_custom_call.1} parent=1 // pred_check_branch
      %128 = sbr.rel (0) target = $region29
    $region28: #{tpu_custom_call.1} parent=1 // pred_region
      %129 = dma.done [#allocation4], 64
    $region29: #{tpu_custom_call.1} parent=1 // pred_fallthru
      _
    %130 = vsyncpa [#allocation3], 1
    %131 = vsyncpa [#allocation6], 1
    %132 = vsyncpa [#allocation4], 1

</llo_original>
